<compile_context>
chip_gen: v6e
topology: v6e:2x2x1
jax: 0.10.0
libtpu: 0.0.40
codegen_flags: <defaults>
</compile_context>

<pallas_src>
import functools
import math

import jax
import jax.numpy as jnp
from jax.experimental import pallas as pl
from jax.experimental.pallas import tpu as pltpu

d_model = 32
dropout_p_default = 0.3
max_len_default = 5000


def sinusoidal_pe_table(max_len, d_model_, dtype=jnp.float32):
    """Same table as the PyTorch module's registered `pe` buffer, shape (L, D)."""
    position = jnp.arange(max_len, dtype=jnp.float32)[:, None]               # (L, 1)
    div_term = jnp.exp(jnp.arange(0, d_model_, 2, dtype=jnp.float32)
                       * (-math.log(10000.0) / d_model_))                    # (D/2,)
    angles = position * div_term                                             # (L, D/2)
    pe = jnp.zeros((max_len, d_model_), dtype=jnp.float32)
    pe = pe.at[:, 0::2].set(jnp.sin(angles))
    pe = pe.at[:, 1::2].set(jnp.cos(angles))
    return pe.astype(dtype)


def _pe_add_kernel(D, x_ref, pe_ref, o_ref):
    """Eval mode: out[:, b*D:(b+1)*D] = x[:, b*D:(b+1)*D] + pe, for every b."""
    pe = pe_ref[...]                                  # (tile_s, D), x.dtype
    nb = x_ref.shape[1] // D
    if nb == 1:
        o_ref[...] = (x_ref[...] + pe).astype(o_ref.dtype)
        return
    for b in range(nb):
        sl = slice(b * D, (b + 1) * D)
        o_ref[:, sl] = (x_ref[:, sl] + pe).astype(o_ref.dtype)


def _pe_add_dropout_kernel(D, drop_thr31, inv_keep, seed_ref, x_ref, pe_ref, o_ref):
    """Train mode: out = dropout(x + pe, p), inverted scaling 1/(1-p).

    Dropout mask comes from a counter-based integer hash of the global element
    index (portable: no pltpu.prng_* needed).
    """
    T, BD = x_ref.shape
    nb = BD // D
    pe = pe_ref[...]                                   # (tile_s, D), x.dtype
    scale = jnp.asarray(inv_keep, dtype=x_ref.dtype)
    thr = jnp.int32(drop_thr31)

    # Hoisted per-tile index planes (the tile index is folded into the row
    # offset, so every grid step draws an independent, uncorrelated stream).
    row0 = (pl.program_id(0) * T).astype(jnp.uint32)
    rows = jax.lax.broadcasted_iota(jnp.int32, (T, D), 0).astype(jnp.uint32) + row0
    cols = jax.lax.broadcasted_iota(jnp.int32, (T, D), 1).astype(jnp.uint32)
    seed_u = seed_ref[0].astype(jnp.uint32) * jnp.uint32(0x9E3779B9)

    for b in range(nb):
        sl = slice(b * D, (b + 1) * D)
        y = x_ref[:, sl] + pe                          # add in x.dtype (bf16-native)

        # lowbias32-style mixer of the global flat element index.
        idx = rows * jnp.uint32(BD) + (cols + jnp.uint32(b * D))
        h = idx ^ seed_u
        h = (h ^ (h >> 16)) * jnp.uint32(0x7FEB352D)
        h = (h ^ (h >> 15)) * jnp.uint32(0x846CA68B)
        h = h ^ (h >> 16)
        u31 = (h >> 1).astype(jnp.int32)               # uniform in [0, 2**31)
        keep = u31 >= thr                              # drop with prob p
        o_ref[:, sl] = jnp.where(keep, y * scale, jnp.zeros_like(y)).astype(o_ref.dtype)


def _pick_tile_s(S, bd, d, itemsize):
    """Rows per grid step from a VMEM byte budget (multiple of 8 sublanes)."""
    if S <= 8:
        return S                                       # single block == full dims (legal)
    budget = 16 * 1024 * 1024                          # fits v5e 16 MiB scoped default
    per_row = 2 * (2 * bd + d) * itemsize + 4 * bd     # dbl-buffered x/out/pe + temps
    tile = min(budget // per_row, 512)                 # ~512 rows already at HBM roofline
    if S >= 16:
        # Guarantee >= 2 grid steps so v7x's two TensorCores both get work.
        tile = min(tile, ((pl.cdiv(S, 2) + 7) // 8) * 8)
    tile = max(8, (tile // 8) * 8)
    return min(tile, (S // 8) * 8)


def positional_encoding(x, pe_table, *, dropout_p=0.1, train=False, seed=0):
    """x: (S, B, D); pe_table: (max_len, D). Returns (S, B, D) in x.dtype."""
    S, B, D = x.shape
    BD = B * D
    x2 = x.reshape(S, BD)                              # free view; lane-dense trailing dim
    pe_s = pe_table[:S].astype(x.dtype)                # (S, D) in x.dtype (bf16-friendly)

    tile_s = _pick_tile_s(S, BD, D, x.dtype.itemsize)
    grid = (pl.cdiv(S, tile_s),)

    out_shape = jax.ShapeDtypeStruct((S, BD), x.dtype)
    cost = pl.CostEstimate(
        flops=2 * S * BD,
        transcendentals=0,
        bytes_accessed=2 * S * BD * x.dtype.itemsize + S * D * x.dtype.itemsize,
    )
    cparams = pltpu.CompilerParams(
        dimension_semantics=("parallel",),
        vmem_limit_bytes=32 * 1024 * 1024,
    )

    if not (train and dropout_p > 0.0):
        # Dropout is identity in eval mode.
        out2 = pl.pallas_call(
            functools.partial(_pe_add_kernel, D),
            out_shape=out_shape,
            grid=grid,
            in_specs=[
                pl.BlockSpec((tile_s, BD), lambda i: (i, 0)),
                pl.BlockSpec((tile_s, D), lambda i: (i, 0)),
            ],
            out_specs=pl.BlockSpec((tile_s, BD), lambda i: (i, 0)),
            compiler_params=cparams,
            cost_estimate=cost,
        )(x2, pe_s)
        return out2.reshape(S, B, D)

    # TODO(synk): PyTorch's dropout RNG stream cannot be reproduced bitwise;
    # distribution/scaling semantics match (drop prob p, keep scaled 1/(1-p)).
    drop_thr31 = min(int(round(dropout_p * (1 << 31))), (1 << 31) - 1)
    kernel = functools.partial(_pe_add_dropout_kernel, D, drop_thr31,
                               1.0 / (1.0 - float(dropout_p)))
    seed_arr = jnp.asarray([seed], dtype=jnp.int32)
    out2 = pl.pallas_call(
        kernel,
        out_shape=out_shape,
        grid_spec=pltpu.PrefetchScalarGridSpec(
            num_scalar_prefetch=1,
            grid=grid,
            in_specs=[
                pl.BlockSpec((tile_s, BD), lambda i, s: (i, 0)),
                pl.BlockSpec((tile_s, D), lambda i, s: (i, 0)),
            ],
            out_specs=pl.BlockSpec((tile_s, BD), lambda i, s: (i, 0)),
        ),
        compiler_params=cparams,
        cost_estimate=cost,
    )(seed_arr, x2, pe_s)
    return out2.reshape(S, B, D)


if __name__ == "__main__":
    S, B, D = 8, 2, d_model
    key = jax.random.PRNGKey(0)
    x = jax.random.normal(key, (S, B, D), dtype=jnp.float32)

    pe_table = sinusoidal_pe_table(max_len_default, D)

    # --- eval mode (dropout inactive): deterministic, check vs reference ---
    y = positional_encoding(x, pe_table, dropout_p=dropout_p_default, train=False)
    jax.block_until_ready(y)
    y_ref = x + pe_table[:S][:, None, :]
    assert jnp.allclose(y, y_ref, rtol=1e-6, atol=1e-6), \
        float(jnp.max(jnp.abs(y - y_ref)))

    # --- train mode: dropout via in-kernel counter-based hash PRNG ---
    p = dropout_p_default
    y_tr = positional_encoding(x, pe_table, dropout_p=p, train=True, seed=1234)
    jax.block_until_ready(y_tr)
    frac_zero = float(jnp.mean((y_tr == 0.0).astype(jnp.float32)))
    assert 0.05 < frac_zero < 0.6, frac_zero
    kept = y_tr != 0.0
    assert jnp.allclose(jnp.where(kept, y_tr, 0.0),
                        jnp.where(kept, y_ref / (1.0 - p), 0.0),
                        rtol=1e-5, atol=1e-5)

    print("KERNEL_OK")
</pallas_src>

<mosaic_0001>
module attributes {stable_mosaic.version = 11 : i64} {
  func.func @_pe_add_kernel(%arg0: i32, %arg1: memref<8x64xf32, #tpu.memory_space<vmem>>, %arg2: memref<8x32xf32, #tpu.memory_space<vmem>>, %arg3: memref<8x64xf32, #tpu.memory_space<vmem>>) attributes {dimension_semantics = [#tpu.dimension_semantics<parallel>], iteration_bounds = array<i64: 1>, scalar_prefetch = 0 : i64, scratch_operands = 0 : i64, tpu.core_type = #tpu.core_type<tc>, window_params = [{transform_indices = @transform_0, window_bounds = array<i64: 8, 64>}, {transform_indices = @transform_1, window_bounds = array<i64: 8, 32>}, {transform_indices = @transform_2, window_bounds = array<i64: 8, 64>}]} {
    %c0 = arith.constant 0 : index
    %c0_0 = arith.constant 0 : index
    %0 = vector.load %arg2[%c0, %c0_0] : memref<8x32xf32, #tpu.memory_space<vmem>>, vector<8x32xf32>
    %c0_1 = arith.constant 0 : index
    %c0_2 = arith.constant 0 : index
    %1 = vector.load %arg1[%c0_1, %c0_2] : memref<8x64xf32, #tpu.memory_space<vmem>>, vector<8x32xf32>
    %2 = arith.addf %1, %0 : vector<8x32xf32>
    %c0_3 = arith.constant 0 : index
    %c0_4 = arith.constant 0 : index
    %3 = vector.load %arg3[%c0_3, %c0_4] : memref<8x64xf32, #tpu.memory_space<vmem>>, vector<8x32xf32>
    tpu.vector_store %arg3[%c0_3, %c0_4], %2 {strides = array<i32>} : memref<8x64xf32, #tpu.memory_space<vmem>>, vector<8x32xf32>,
    %c0_5 = arith.constant 0 : index
    %c32 = arith.constant 32 : index
    %4 = vector.load %arg1[%c0_5, %c32] : memref<8x64xf32, #tpu.memory_space<vmem>>, vector<8x32xf32>
    %5 = arith.addf %4, %0 : vector<8x32xf32>
    %c0_6 = arith.constant 0 : index
    %c32_7 = arith.constant 32 : index
    %6 = vector.load %arg3[%c0_6, %c32_7] : memref<8x64xf32, #tpu.memory_space<vmem>>, vector<8x32xf32>
    tpu.vector_store %arg3[%c0_6, %c32_7], %5 {strides = array<i32>} : memref<8x64xf32, #tpu.memory_space<vmem>>, vector<8x32xf32>,
    return
  }
  func.func @transform_0(%arg0: i32) -> (i32, i32) {
    %c0_i32 = arith.constant 0 : i32
    %c0_i32_0 = arith.constant 0 : i32
    return %arg0, %c0_i32 : i32, i32
  }
  func.func @transform_1(%arg0: i32) -> (i32, i32) {
    %c0_i32 = arith.constant 0 : i32
    %c0_i32_0 = arith.constant 0 : i32
    return %arg0, %c0_i32 : i32, i32
  }
  func.func @transform_2(%arg0: i32) -> (i32, i32) {
    %c0_i32 = arith.constant 0 : i32
    %c0_i32_0 = arith.constant 0 : i32
    return %arg0, %c0_i32 : i32, i32
  }
}

</mosaic_0001>

<llo_original>
// kernel: tpu_custom_call.1
$region0: #{tpu_custom_call.1}
  #allocation0 [shape = 'u32[]', space=smem, size = 0x4, offset = 0x4, fixed_abs, tag = 'smem constant byte address 0x4 - core index']
  #allocation1 [shape = 'u32[144,128]{1,0:T(1,128)}', space=vmem, size = 0x12000, scoped, tag = 'internal scratch']
  %s0 = inlined_call_operand.hbm [shape: f32[8,64], index: 0, kind: input, shape index: {}]
  %s1 = inlined_call_operand.hbm [shape: f32[8,32], index: 1, kind: input, shape index: {}]
  %s2 = inlined_call_operand.hbm [shape: f32[8,64], index: 2, kind: output, shape index: {}]
  %s3 = sld [smem:[#allocation0]]
  $region26: #{tpu_custom_call.1} parent=0
    _
  %s5 = ssub.s32 1, %s3
  %s6 = scalar_select 0, %s5, %s3
  $region1: #{tpu_custom_call.1} parent=0
    #allocation2 [shape = 'u8[4096]{0}', space=vmem, size = 0x1000, scoped, tag = 'input window, operand 0, single buffered']
    #allocation3 [shape = 's32[1]{0}', space=sflag, size = 0x4, scoped, tag = 'scoped memory for tpu_custom_call.1']
    #allocation4 [shape = 's32[1]{0}', space=sflag, size = 0x4, scoped, tag = 'scoped memory for tpu_custom_call.1']
    #allocation5 [shape = 'u8[4096]{0}', space=vmem, size = 0x1000, scoped, tag = 'input window, operand 1, single buffered']
    #allocation6 [shape = 's32[1]{0}', space=sflag, size = 0x4, scoped, tag = 'scoped memory for tpu_custom_call.1']
    #allocation7 [shape = 'u8[4096]{0}', space=vmem, size = 0x1000, scoped, tag = 'output window, operand 0, single buffered']
    %7 = vsyncpa [#allocation3], 0
    %8 = vsyncpa [#allocation6], 0
    %9 = vsyncpa [#allocation4], 0
    // Predicated region
    $region2: #{tpu_custom_call.1} parent=1 // pred_check
      _
    $region3: #{tpu_custom_call.1} parent=1 // pred_check_branch
      %11 = sbr.rel (0) target = $region5
    $region4: #{tpu_custom_call.1} parent=1 // pred_region
      %s13 = ssub.s32 128, 128
      %14 = vsyncadd [#allocation3], %s13
      %s16 = sshll.u32 [#allocation2], 4
      %s17 = int_to_ptr.vmem [resolvable:$true] %s16
      %19 = dma.hbm_to_vmem [thread:$0]  %s0, 128, %s17, [#allocation3]
    $region5: #{tpu_custom_call.1} parent=1 // pred_fallthru
      _
    // Predicated region
    $region6: #{tpu_custom_call.1} parent=1 // pred_check
      _
    $region7: #{tpu_custom_call.1} parent=1 // pred_check_branch
      %21 = sbr.rel (0) target = $region9
    $region8: #{tpu_custom_call.1} parent=1 // pred_region
      %s23 = ssub.s32 128, 128
      %24 = vsyncadd [#allocation6], %s23
      %s26 = sshll.u32 [#allocation5], 4
      %s27 = int_to_ptr.vmem [resolvable:$true] %s26
      %29 = dma.hbm_to_vmem [thread:$0]  %s1, 128, %s27, [#allocation6]
    $region9: #{tpu_custom_call.1} parent=1 // pred_fallthru
      _
    // Predicated region
    $region10: #{tpu_custom_call.1} parent=1 // pred_check
      _
    $region11: #{tpu_custom_call.1} parent=1 // pred_check_branch
      %31 = sbr.rel (0) target = $region13
    $region12: #{tpu_custom_call.1} parent=1 // pred_region
      %32 = dma.done [#allocation3], 128
    $region13: #{tpu_custom_call.1} parent=1 // pred_fallthru
      _
    // Predicated region
    $region14: #{tpu_custom_call.1} parent=1 // pred_check
      _
    $region15: #{tpu_custom_call.1} parent=1 // pred_check_branch
      %34 = sbr.rel (0) target = $region17
    $region16: #{tpu_custom_call.1} parent=1 // pred_region
      %35 = dma.done [#allocation6], 128
    $region17: #{tpu_custom_call.1} parent=1 // pred_fallthru
      _
    %v36 = vld [vmem:[#allocation5] sm:$0xff]
    %v37 = vld [vmem:[#allocation2] sm:$0xff]
    %v38 = vadd.f32 %v37, %v36
    %vm39 = vcmask 261120
    %40 = vst.msk [vmem:[#allocation7] sm:$0xff] %vm39, %v38
    %v41 = vld [vmem:[#allocation2] sm:$0xff]
    %43 = vrot.lane.b32.xlu0 %v36, 32
    %v44 = vpop.permute.xlu0 %43
    %v46 = vadd.f32 %v41, %v44
    %vm47 = vcmask 523520
    %48 = vst.msk [vmem:[#allocation7] sm:$0xff] %vm47, %v46
    // Predicated region
    $region18: #{tpu_custom_call.1} parent=1 // pred_check
      _
    $region19: #{tpu_custom_call.1} parent=1 // pred_check_branch
      %50 = sbr.rel (0) target = $region21
    $region20: #{tpu_custom_call.1} parent=1 // pred_region
      %s52 = ssub.s32 128, 128
      %53 = vsyncadd [#allocation4], %s52
      %s55 = sshll.u32 [#allocation7], 4
      %s56 = int_to_ptr.vmem [resolvable:$true] %s55
      %58 = dma.vmem_to_hbm [thread:$0]  %s56, 128, %s2, [#allocation4]
    $region21: #{tpu_custom_call.1} parent=1 // pred_fallthru
      _
    // Predicated region
    $region22: #{tpu_custom_call.1} parent=1 // pred_check
      _
    $region23: #{tpu_custom_call.1} parent=1 // pred_check_branch
      %60 = sbr.rel (0) target = $region25
    $region24: #{tpu_custom_call.1} parent=1 // pred_region
      %61 = dma.done [#allocation4], 128
    $region25: #{tpu_custom_call.1} parent=1 // pred_fallthru
      _
    %62 = vsyncpa [#allocation3], 1
    %63 = vsyncpa [#allocation6], 1
    %64 = vsyncpa [#allocation4], 1

</llo_original>
